<compile_context>
chip_gen: v5e
topology: v5e:2x2
jax: 0.10.0
libtpu: 0.0.40
codegen_flags: <defaults>
</compile_context>

<pallas_src>
import jax
import jax.numpy as jnp
from jax.experimental import pallas as pl
from jax.experimental.pallas import tpu as pltpu


def actor_kernel(x_ref, w1_ref, b1_ref, w2_ref, b2_ref, w3_ref, b3_ref,
                 w4_ref, b4_ref, o_ref):
    x = x_ref[...]                                   # bf16 (TB, state_dim)

    # fc1 + relu (bf16 operands, f32 accumulation on the MXU)
    h = jnp.dot(x, w1_ref[...], preferred_element_type=jnp.float32) + b1_ref[...]
    h = jnp.maximum(h, 0.0)
    # fc2 + relu
    h = jnp.dot(h.astype(jnp.bfloat16), w2_ref[...],
                preferred_element_type=jnp.float32) + b2_ref[...]
    h = jnp.maximum(h, 0.0)
    # fc3 + relu
    h = jnp.dot(h.astype(jnp.bfloat16), w3_ref[...],
                preferred_element_type=jnp.float32) + b3_ref[...]
    h = jnp.maximum(h, 0.0)
    # fc4 (logits) over the lane-dense padded output block; padded bias cols are -1e30
    logits = jnp.dot(h.astype(jnp.bfloat16), w4_ref[...],
                     preferred_element_type=jnp.float32) + b4_ref[...]

    # Numerically stable softmax along the full 128-lane block.
    # Padded columns: exp(-1e30 - m) == 0, so they contribute nothing to the denom.
    m = jnp.max(logits, axis=-1, keepdims=True)
    e = jnp.exp(logits - m)
    denom = jnp.sum(e, axis=-1, keepdims=True)
    # EUP approx reciprocal (off the VPU divide path) + one Newton step for f32 accuracy.
    inv = pl.reciprocal(denom, approx=True)
    inv = inv * (2.0 - denom * inv)
    o_ref[...] = (e * inv).astype(o_ref.dtype)


def _round_up(x, m):
    return ((x + m - 1) // m) * m


_SUBLANE = 16  # bf16 sublane packing


def _pick_tb(B, batch_tile):
    if B <= _SUBLANE:
        return B                                   # single full-extent tile
    bt = _round_up(max(int(batch_tile), _SUBLANE), _SUBLANE)
    # >= 2 balanced grid steps when possible (v7x megacore), never more than one
    # padded tile of the whole batch.
    tb = min(bt, _round_up(pl.cdiv(B, 2), _SUBLANE), _round_up(B, _SUBLANE))
    return max(tb, _SUBLANE)


def actor_forward(state, params, *, batch_tile=2048):
    """state: (B, state_dim) f32. params: dict of weights (in, out) f32 and biases (1, out) f32."""
    B, state_dim = state.shape
    h1 = params["w1"].shape[1]
    h2 = params["w2"].shape[1]
    h3 = params["w3"].shape[1]
    action_dim = params["w4"].shape[1]
    pad_out = _round_up(action_dim, 128)            # lane-dense softmax/output block

    TB = _pick_tb(B, batch_tile)
    grid = (pl.cdiv(B, TB),)

    # bf16 matmul operands; biases stay f32 (added into the f32 accumulator).
    x_bf = state.astype(jnp.bfloat16)
    w1 = params["w1"].astype(jnp.bfloat16)
    w2 = params["w2"].astype(jnp.bfloat16)
    w3 = params["w3"].astype(jnp.bfloat16)
    w4 = jnp.pad(params["w4"], ((0, 0), (0, pad_out - action_dim))).astype(jnp.bfloat16)
    b1, b2, b3 = params["b1"], params["b2"], params["b3"]
    b4 = jnp.pad(params["b4"], ((0, 0), (0, pad_out - action_dim)),
                 constant_values=-1e30)             # padded logits -> exp(...) == 0

    row_map = lambda i: (i, 0)      # activation tiles march down the batch dim
    const_map = lambda i: (0, 0)    # params stay VMEM-resident across all grid steps

    in_specs = [
        pl.BlockSpec((TB, state_dim), row_map),
        pl.BlockSpec(w1.shape, const_map),
        pl.BlockSpec(b1.shape, const_map),
        pl.BlockSpec(w2.shape, const_map),
        pl.BlockSpec(b2.shape, const_map),
        pl.BlockSpec(w3.shape, const_map),
        pl.BlockSpec(b3.shape, const_map),
        pl.BlockSpec(w4.shape, const_map),
        pl.BlockSpec(b4.shape, const_map),
    ]
    out_specs = pl.BlockSpec((TB, pad_out), row_map)

    weight_bytes = sum(int(p.size) * p.dtype.itemsize
                       for p in (w1, b1, w2, b2, w3, b3, w4, b4))
    flops = 2 * B * (state_dim * h1 + h1 * h2 + h2 * h3 + h3 * pad_out)
    cost = pl.CostEstimate(
        flops=flops,
        transcendentals=B * pad_out,                                 # exp in softmax
        bytes_accessed=B * state_dim * 2 + B * pad_out * 4 + weight_bytes,
    )

    # Per-step VMEM estimate: double-buffered x/out tiles + resident params + f32 intermediates.
    vmem_est = (2 * TB * state_dim * 2
                + 2 * TB * pad_out * 4
                + weight_bytes
                + TB * (h1 + h2 + h3 + pad_out) * 4)
    vmem_limit = None
    if vmem_est > 14 * 1024 * 1024:                  # beyond v5e's 16 MiB default scope
        vmem_limit = min(int(vmem_est * 2), 60 * 1024 * 1024)

    out_padded = pl.pallas_call(
        actor_kernel,
        out_shape=jax.ShapeDtypeStruct((B, pad_out), jnp.float32),
        grid=grid,
        in_specs=in_specs,
        out_specs=out_specs,
        compiler_params=pltpu.CompilerParams(
            dimension_semantics=("parallel",),       # lets v7x use both TCs
            vmem_limit_bytes=vmem_limit,
        ),
        cost_estimate=cost,
    )(x_bf, w1, b1, w2, b2, w3, b3, w4, b4)

    return out_padded[:, :action_dim]


def init_params(key, state_dim, action_dim):
    """Deterministic init mimicking PyTorch nn.Linear default: U(-1/sqrt(fan_in), 1/sqrt(fan_in))."""
    dims = [(state_dim, 128), (128, 256), (256, 128), (128, action_dim)]
    params = {}
    for i, (fan_in, fan_out) in enumerate(dims, start=1):
        key, kw, kb = jax.random.split(key, 3)
        bound = 1.0 / jnp.sqrt(fan_in)
        params[f"w{i}"] = jax.random.uniform(
            kw, (fan_in, fan_out), jnp.float32, minval=-bound, maxval=bound)
        params[f"b{i}"] = jax.random.uniform(
            kb, (1, fan_out), jnp.float32, minval=-bound, maxval=bound)
    return params


def actor_ref(state, params):
    h = jnp.maximum(state @ params["w1"] + params["b1"], 0.0)
    h = jnp.maximum(h @ params["w2"] + params["b2"], 0.0)
    h = jnp.maximum(h @ params["w3"] + params["b3"], 0.0)
    logits = h @ params["w4"] + params["b4"]
    return jax.nn.softmax(logits, axis=-1)


if __name__ == "__main__":
    state_dim, action_dim, batch = 16, 8, 64
    key = jax.random.PRNGKey(0)
    key, ks = jax.random.split(key)
    state = jax.random.normal(ks, (batch, state_dim), jnp.float32)
    params = init_params(key, state_dim, action_dim)

    # Default batch_tile (2048) — TB logic still produces 2 grid steps (32+32) at this
    # test scale, exercising the multi-step / megacore path.
    out = actor_forward(state, params)
    out = jax.block_until_ready(out)

    ref = actor_ref(state, params)
    assert out.shape == (batch, action_dim), out.shape
    # bf16 matmul operands with f32 accumulation vs pure-f32 reference: allow small tol.
    assert jnp.allclose(out, ref, atol=1e-2, rtol=1e-2), "mismatch vs reference"
    assert jnp.allclose(jnp.sum(out, axis=-1), 1.0, atol=1e-5), "softmax rows must sum to 1"
    print("KERNEL_OK")
</pallas_src>

<mosaic_0001>
module attributes {stable_mosaic.version = 11 : i64} {
  func.func @actor_kernel(%arg0: i32, %arg1: memref<32x16xbf16, #tpu.memory_space<vmem>>, %arg2: memref<16x128xbf16, #tpu.memory_space<vmem>>, %arg3: memref<1x128xf32, #tpu.memory_space<vmem>>, %arg4: memref<128x256xbf16, #tpu.memory_space<vmem>>, %arg5: memref<1x256xf32, #tpu.memory_space<vmem>>, %arg6: memref<256x128xbf16, #tpu.memory_space<vmem>>, %arg7: memref<1x128xf32, #tpu.memory_space<vmem>>, %arg8: memref<128x128xbf16, #tpu.memory_space<vmem>>, %arg9: memref<1x128xf32, #tpu.memory_space<vmem>>, %arg10: memref<32x128xf32, #tpu.memory_space<vmem>>) attributes {dimension_semantics = [#tpu.dimension_semantics<parallel>], iteration_bounds = array<i64: 2>, scalar_prefetch = 0 : i64, scratch_operands = 0 : i64, tpu.core_type = #tpu.core_type<tc>, window_params = [{transform_indices = @transform_0, window_bounds = array<i64: 32, 16>}, {pipeline_mode = #tpu.pipeline_mode<synchronous>, transform_indices = @transform_1, window_bounds = array<i64: 16, 128>}, {pipeline_mode = #tpu.pipeline_mode<synchronous>, transform_indices = @transform_2, window_bounds = array<i64: 1, 128>}, {pipeline_mode = #tpu.pipeline_mode<synchronous>, transform_indices = @transform_3, window_bounds = array<i64: 128, 256>}, {pipeline_mode = #tpu.pipeline_mode<synchronous>, transform_indices = @transform_4, window_bounds = array<i64: 1, 256>}, {pipeline_mode = #tpu.pipeline_mode<synchronous>, transform_indices = @transform_5, window_bounds = array<i64: 256, 128>}, {pipeline_mode = #tpu.pipeline_mode<synchronous>, transform_indices = @transform_6, window_bounds = array<i64: 1, 128>}, {pipeline_mode = #tpu.pipeline_mode<synchronous>, transform_indices = @transform_7, window_bounds = array<i64: 128, 128>}, {pipeline_mode = #tpu.pipeline_mode<synchronous>, transform_indices = @transform_8, window_bounds = array<i64: 1, 128>}, {transform_indices = @transform_9, window_bounds = array<i64: 32, 128>}]} {
    %c0 = arith.constant 0 : index
    %c0_0 = arith.constant 0 : index
    %0 = vector.load %arg1[%c0, %c0_0] : memref<32x16xbf16, #tpu.memory_space<vmem>>, vector<32x16xbf16>
    %c0_1 = arith.constant 0 : index
    %c0_2 = arith.constant 0 : index
    %1 = vector.load %arg2[%c0_1, %c0_2] : memref<16x128xbf16, #tpu.memory_space<vmem>>, vector<16x128xbf16>
    %cst = arith.constant dense<0.000000e+00> : vector<32x128xf32>
    %2 = tpu.matmul %0, %1, %cst {dimension_numbers = #tpu.dot_dimension_numbers<[1], [0], [0], [1], [0, 0, 1, 1], [], []>} : vector<32x16xbf16>, vector<16x128xbf16>, vector<32x128xf32> -> vector<32x128xf32>
    %c0_3 = arith.constant 0 : index
    %c0_4 = arith.constant 0 : index
    %3 = vector.load %arg3[%c0_3, %c0_4] : memref<1x128xf32, #tpu.memory_space<vmem>>, vector<1x128xf32>
    %4 = vector.broadcast %3 : vector<1x128xf32> to vector<32x128xf32>
    %5 = arith.addf %2, %4 : vector<32x128xf32>
    %cst_5 = arith.constant 0.000000e+00 : f32
    %6 = vector.broadcast %cst_5 : f32 to vector<32x128xf32>
    %7 = arith.maximumf %5, %6 : vector<32x128xf32>
    %8 = arith.truncf %7 : vector<32x128xf32> to vector<32x128xbf16>
    %c0_6 = arith.constant 0 : index
    %c0_7 = arith.constant 0 : index
    %9 = vector.load %arg4[%c0_6, %c0_7] : memref<128x256xbf16, #tpu.memory_space<vmem>>, vector<128x256xbf16>
    %cst_8 = arith.constant dense<0.000000e+00> : vector<32x256xf32>
    %10 = tpu.matmul %8, %9, %cst_8 {dimension_numbers = #tpu.dot_dimension_numbers<[1], [0], [0], [1], [0, 0, 1, 1], [], []>} : vector<32x128xbf16>, vector<128x256xbf16>, vector<32x256xf32> -> vector<32x256xf32>
    %c0_9 = arith.constant 0 : index
    %c0_10 = arith.constant 0 : index
    %11 = vector.load %arg5[%c0_9, %c0_10] : memref<1x256xf32, #tpu.memory_space<vmem>>, vector<1x256xf32>
    %12 = vector.broadcast %11 : vector<1x256xf32> to vector<32x256xf32>
    %13 = arith.addf %10, %12 : vector<32x256xf32>
    %cst_11 = arith.constant 0.000000e+00 : f32
    %14 = vector.broadcast %cst_11 : f32 to vector<32x256xf32>
    %15 = arith.maximumf %13, %14 : vector<32x256xf32>
    %16 = arith.truncf %15 : vector<32x256xf32> to vector<32x256xbf16>
    %c0_12 = arith.constant 0 : index
    %c0_13 = arith.constant 0 : index
    %17 = vector.load %arg6[%c0_12, %c0_13] : memref<256x128xbf16, #tpu.memory_space<vmem>>, vector<256x128xbf16>
    %cst_14 = arith.constant dense<0.000000e+00> : vector<32x128xf32>
    %18 = tpu.matmul %16, %17, %cst_14 {dimension_numbers = #tpu.dot_dimension_numbers<[1], [0], [0], [1], [0, 0, 1, 1], [], []>} : vector<32x256xbf16>, vector<256x128xbf16>, vector<32x128xf32> -> vector<32x128xf32>
    %c0_15 = arith.constant 0 : index
    %c0_16 = arith.constant 0 : index
    %19 = vector.load %arg7[%c0_15, %c0_16] : memref<1x128xf32, #tpu.memory_space<vmem>>, vector<1x128xf32>
    %20 = vector.broadcast %19 : vector<1x128xf32> to vector<32x128xf32>
    %21 = arith.addf %18, %20 : vector<32x128xf32>
    %cst_17 = arith.constant 0.000000e+00 : f32
    %22 = vector.broadcast %cst_17 : f32 to vector<32x128xf32>
    %23 = arith.maximumf %21, %22 : vector<32x128xf32>
    %24 = arith.truncf %23 : vector<32x128xf32> to vector<32x128xbf16>
    %c0_18 = arith.constant 0 : index
    %c0_19 = arith.constant 0 : index
    %25 = vector.load %arg8[%c0_18, %c0_19] : memref<128x128xbf16, #tpu.memory_space<vmem>>, vector<128x128xbf16>
    %cst_20 = arith.constant dense<0.000000e+00> : vector<32x128xf32>
    %26 = tpu.matmul %24, %25, %cst_20 {dimension_numbers = #tpu.dot_dimension_numbers<[1], [0], [0], [1], [0, 0, 1, 1], [], []>} : vector<32x128xbf16>, vector<128x128xbf16>, vector<32x128xf32> -> vector<32x128xf32>
    %c0_21 = arith.constant 0 : index
    %c0_22 = arith.constant 0 : index
    %27 = vector.load %arg9[%c0_21, %c0_22] : memref<1x128xf32, #tpu.memory_space<vmem>>, vector<1x128xf32>
    %28 = vector.broadcast %27 : vector<1x128xf32> to vector<32x128xf32>
    %29 = arith.addf %26, %28 : vector<32x128xf32>
    %cst_23 = arith.constant dense<0xFF800000> : vector<32xf32>
    %30 = vector.multi_reduction <maximumf>, %29, %cst_23 [1] : vector<32x128xf32> to vector<32xf32>
    %31 = vector.shape_cast %30 : vector<32xf32> to vector<32x1xf32>
    %32 = vector.broadcast %31 : vector<32x1xf32> to vector<32x128xf32>
    %33 = arith.subf %29, %32 : vector<32x128xf32>
    %34 = math.exp %33 : vector<32x128xf32>
    %cst_24 = arith.constant dense<0.000000e+00> : vector<32xf32>
    %35 = vector.multi_reduction <add>, %34, %cst_24 [1] : vector<32x128xf32> to vector<32xf32>
    %36 = vector.shape_cast %35 : vector<32xf32> to vector<32x1xf32>
    %37 = tpu.reciprocal %36 {approx = true} : vector<32x1xf32> -> vector<32x1xf32>
    %38 = arith.mulf %36, %37 : vector<32x1xf32>
    %cst_25 = arith.constant 2.000000e+00 : f32
    %39 = vector.broadcast %cst_25 : f32 to vector<32x1xf32>
    %40 = arith.subf %39, %38 : vector<32x1xf32>
    %41 = arith.mulf %37, %40 : vector<32x1xf32>
    %42 = vector.broadcast %41 : vector<32x1xf32> to vector<32x128xf32>
    %43 = arith.mulf %34, %42 : vector<32x128xf32>
    %c0_26 = arith.constant 0 : index
    %c0_27 = arith.constant 0 : index
    %44 = vector.load %arg10[%c0_26, %c0_27] : memref<32x128xf32, #tpu.memory_space<vmem>>, vector<32x128xf32>
    tpu.vector_store %arg10[%c0_26, %c0_27], %43 {strides = array<i32>} : memref<32x128xf32, #tpu.memory_space<vmem>>, vector<32x128xf32>,
    return
  }
  func.func @transform_0(%arg0: i32) -> (i32, i32) {
    %c0_i32 = arith.constant 0 : i32
    %c0_i32_0 = arith.constant 0 : i32
    return %arg0, %c0_i32 : i32, i32
  }
  func.func @transform_1(%arg0: i32) -> (i32, i32) {
    %c0_i32 = arith.constant 0 : i32
    %c0_i32_0 = arith.constant 0 : i32
    %c0_i32_1 = arith.constant 0 : i32
    return %c0_i32, %c0_i32_0 : i32, i32
  }
  func.func @transform_2(%arg0: i32) -> (i32, i32) {
    %c0_i32 = arith.constant 0 : i32
    %c0_i32_0 = arith.constant 0 : i32
    %c0_i32_1 = arith.constant 0 : i32
    return %c0_i32, %c0_i32_0 : i32, i32
  }
  func.func @transform_3(%arg0: i32) -> (i32, i32) {
    %c0_i32 = arith.constant 0 : i32
    %c0_i32_0 = arith.constant 0 : i32
    %c0_i32_1 = arith.constant 0 : i32
    return %c0_i32, %c0_i32_0 : i32, i32
  }
  func.func @transform_4(%arg0: i32) -> (i32, i32) {
    %c0_i32 = arith.constant 0 : i32
    %c0_i32_0 = arith.constant 0 : i32
    %c0_i32_1 = arith.constant 0 : i32
    return %c0_i32, %c0_i32_0 : i32, i32
  }
  func.func @transform_5(%arg0: i32) -> (i32, i32) {
    %c0_i32 = arith.constant 0 : i32
    %c0_i32_0 = arith.constant 0 : i32
    %c0_i32_1 = arith.constant 0 : i32
    return %c0_i32, %c0_i32_0 : i32, i32
  }
  func.func @transform_6(%arg0: i32) -> (i32, i32) {
    %c0_i32 = arith.constant 0 : i32
    %c0_i32_0 = arith.constant 0 : i32
    %c0_i32_1 = arith.constant 0 : i32
    return %c0_i32, %c0_i32_0 : i32, i32
  }
  func.func @transform_7(%arg0: i32) -> (i32, i32) {
    %c0_i32 = arith.constant 0 : i32
    %c0_i32_0 = arith.constant 0 : i32
    %c0_i32_1 = arith.constant 0 : i32
    return %c0_i32, %c0_i32_0 : i32, i32
  }
  func.func @transform_8(%arg0: i32) -> (i32, i32) {
    %c0_i32 = arith.constant 0 : i32
    %c0_i32_0 = arith.constant 0 : i32
    %c0_i32_1 = arith.constant 0 : i32
    return %c0_i32, %c0_i32_0 : i32, i32
  }
  func.func @transform_9(%arg0: i32) -> (i32, i32) {
    %c0_i32 = arith.constant 0 : i32
    %c0_i32_0 = arith.constant 0 : i32
    return %arg0, %c0_i32 : i32, i32
  }
}

</mosaic_0001>

<llo_original>
// kernel: tpu_custom_call.1
$region0: #{tpu_custom_call.1}
  #allocation0 [shape = 'u32[]', space=smem, size = 0x4, offset = 0x4, fixed_abs, tag = 'smem constant byte address 0x4 - core index']
  #allocation1 [shape = 'u32[72,128]{1,0:T(1,128)}', space=vmem, size = 0x9000, scoped, tag = 'internal scratch']
  %s0 = inlined_call_operand.vmem [shape: bf16[64,16], index: 0, kind: input, shape index: {}]
  %s1 = inlined_call_operand.vmem [shape: bf16[16,128], index: 1, kind: input, shape index: {}]
  %s2 = inlined_call_operand.vmem [shape: f32[1,128], index: 2, kind: input, shape index: {}]
  %s3 = inlined_call_operand.hbm [shape: bf16[128,256], index: 3, kind: input, shape index: {}]
  %s4 = inlined_call_operand.vmem [shape: f32[1,256], index: 4, kind: input, shape index: {}]
  %s5 = inlined_call_operand.hbm [shape: bf16[256,128], index: 5, kind: input, shape index: {}]
  %s6 = inlined_call_operand.vmem [shape: f32[1,128], index: 6, kind: input, shape index: {}]
  %s7 = inlined_call_operand.hbm [shape: bf16[128,128], index: 7, kind: input, shape index: {}]
  %s8 = inlined_call_operand.vmem [shape: f32[1,128], index: 8, kind: input, shape index: {}]
  %s9 = inlined_call_operand.hbm [shape: f32[64,128], index: 9, kind: output, shape index: {}]
  %s10 = sld [smem:[#allocation0]]
  $region81: #{tpu_custom_call.1} parent=0
    _
  %s12 = ssub.s32 1, %s10
  %s13 = scalar_select 0, %s12, %s10
  $region1: #{tpu_custom_call.1} parent=0
    #allocation2 [shape = 'u8[65536]{0}', space=vmem, size = 0x10000, scoped, tag = 'input window, operand 3, single buffered']
    #allocation3 [shape = 's32[2]{0}', space=sflag, size = 0x8, scoped, tag = 'scoped memory for tpu_custom_call.1']
    #allocation4 [shape = 's32[2]{0}', space=sflag, size = 0x8, scoped, tag = 'scoped memory for tpu_custom_call.1']
    #allocation5 [shape = 'u8[65536]{0}', space=vmem, size = 0x10000, scoped, tag = 'input window, operand 5, single buffered']
    #allocation6 [shape = 's32[1]{0}', space=sflag, size = 0x4, scoped, tag = 'scoped memory for tpu_custom_call.1']
    #allocation7 [shape = 'u8[32768]{0}', space=vmem, size = 0x8000, scoped, tag = 'input window, operand 7, single buffered']
    #allocation8 [shape = 'u8[32768]{0}', space=vmem, size = 0x8000, scoped, tag = 'output window, operand 0']
    %14 = vsyncpa [#allocation3], 0
    %15 = vsyncpa [#allocation6], 0
    %16 = vsyncpa [#allocation4], 0
    %s17 = scalar_lea.sflag [#allocation4], 1
    %18 = vsyncpa %s17, 0
    loop: start=0, step=1, limit=4
    $region2: #{tpu_custom_call.1} parent=1 // loop_pre_header
      _
    $region3: #{tpu_custom_call.1} parent=1 // loop_header
      %s20 = sphi 0, %s24
      %p21 = scmp.ge.s32.totalorder %s20, 4
      %s30 = sphi 0, %s32
      %s33 = sphi 0, %s30
      %s34 = sphi 0, %s33
      %s50 = sphi 0, %s34
      %s54 = sphi 0, %s54
      %s56 = sphi 0, %s54
      %s57 = sphi 0, %s56
      %s71 = sphi 0, %s57
      %s75 = sphi 0, %s75
      %s77 = sphi 0, %s75
      %s78 = sphi 0, %s77
      %s92 = sphi 0, %s78
      %s96 = sphi 0, %s96
      %s98 = sphi 0, %s96
      %s99 = sphi 0, %s98
      %s113 = sphi 0, %s99
      %s117 = sphi 0, %s117
      %s119 = sphi 0, %s117
      %s120 = sphi 0, %s119
      %s134 = sphi 0, %s120
      %s138 = sphi 0, %s138
      %s140 = sphi 0, %s138
      %s141 = sphi 0, %s140
      %s155 = sphi 0, %s141
      %s159 = sphi 0, %s159
      %s161 = sphi 0, %s159
      %s162 = sphi 0, %s161
      %s176 = sphi 0, %s162
      %s180 = sphi 0, %s180
      %s182 = sphi 0, %s180
      %s183 = sphi 0, %s182
      %s197 = sphi 0, %s183
      %s201 = sphi 0, %s201
      %s203 = sphi 0, %s201
      %s204 = sphi 0, %s203
      %s218 = sphi 0, %s204
      %s224 = sphi 0, %s226
      %s227 = sphi 0, %s224
      %s228 = sphi 0, %s227
      %s244 = sphi 0, %s228
    $region4: #{tpu_custom_call.1} parent=1 // loop_header_branch
      %23 = sbr.rel (%p21) target = $region8
    $region5: #{tpu_custom_call.1} parent=1 // loop_body
      %s25 = ssub.s32 %s20, 1
      %s26 = ssub.s32 %s20, 2
      %s27 = sadd.s32 %s20, 1
      %s28 = ssub.s32 %s20, %s27
      %p29 = scmp.eq.s32.totalorder %s28, 0
      %s31 = sadd.s32 %s30, 1
      %s32 = scalar_select %p29, %s30, %s31
      %p35 = pneg %p29
      %p36 = scmp.eq.s32.totalorder %s20, 1
      %p37 = por %p35, %p36
      %p38 = scmp.ne.s32.totalorder %s30, %s33
      %p39 = scmp.eq.s32.totalorder %s20, 0
      %p40 = por %p38, %p39
      %p41 = scmp.ne.s32.totalorder %s30, %s33
      %p42 = scmp.eq.s32.totalorder %s25, 1
      %p43 = por %p41, %p42
      %p44 = scmp.ne.s32.totalorder %s33, %s34
      %p45 = scmp.eq.s32.totalorder %s25, 0
      %p46 = por %p44, %p45
      %p47 = scmp.ne.s32.totalorder %s33, %s34
      %p48 = scmp.eq.s32.totalorder %s26, 1
      %p49 = por %p47, %p48
      %p51 = scmp.ne.s32.totalorder %s34, %s50
      %p52 = scmp.eq.s32.totalorder %s26, 0
      %p53 = por %p51, %p52
      %s55 = sadd.s32 %s54, 1
      %p58 = scmp.eq.s32.totalorder %s20, 1
      %p59 = scmp.ne.s32.totalorder %s54, %s56
      %p60 = scmp.eq.s32.totalorder %s20, 0
      %p61 = por %p59, %p60
      %p62 = scmp.ne.s32.totalorder %s54, %s56
      %p63 = scmp.eq.s32.totalorder %s25, 1
      %p64 = por %p62, %p63
      %p65 = scmp.ne.s32.totalorder %s56, %s57
      %p66 = scmp.eq.s32.totalorder %s25, 0
      %p67 = por %p65, %p66
      %p68 = scmp.ne.s32.totalorder %s56, %s57
      %p69 = scmp.eq.s32.totalorder %s26, 1
      %p70 = por %p68, %p69
      %p72 = scmp.ne.s32.totalorder %s57, %s71
      %p73 = scmp.eq.s32.totalorder %s26, 0
      %p74 = por %p72, %p73
      %s76 = sadd.s32 %s75, 1
      %p79 = scmp.eq.s32.totalorder %s20, 1
      %p80 = scmp.ne.s32.totalorder %s75, %s77
      %p81 = scmp.eq.s32.totalorder %s20, 0
      %p82 = por %p80, %p81
      %p83 = scmp.ne.s32.totalorder %s75, %s77
      %p84 = scmp.eq.s32.totalorder %s25, 1
      %p85 = por %p83, %p84
      %p86 = scmp.ne.s32.totalorder %s77, %s78
      %p87 = scmp.eq.s32.totalorder %s25, 0
      %p88 = por %p86, %p87
      %p89 = scmp.ne.s32.totalorder %s77, %s78
      %p90 = scmp.eq.s32.totalorder %s26, 1
      %p91 = por %p89, %p90
      %p93 = scmp.ne.s32.totalorder %s78, %s92
      %p94 = scmp.eq.s32.totalorder %s26, 0
      %p95 = por %p93, %p94
      %s97 = sadd.s32 %s96, 1
      %p100 = scmp.eq.s32.totalorder %s20, 1
      %p101 = scmp.ne.s32.totalorder %s96, %s98
      %p102 = scmp.eq.s32.totalorder %s20, 0
      %p103 = por %p101, %p102
      %p104 = scmp.ne.s32.totalorder %s96, %s98
      %p105 = scmp.eq.s32.totalorder %s25, 1
      %p106 = por %p104, %p105
      %p107 = scmp.ne.s32.totalorder %s98, %s99
      %p108 = scmp.eq.s32.totalorder %s25, 0
      %p109 = por %p107, %p108
      %p110 = scmp.ne.s32.totalorder %s98, %s99
      %p111 = scmp.eq.s32.totalorder %s26, 1
      %p112 = por %p110, %p111
      %p114 = scmp.ne.s32.totalorder %s99, %s113
      %p115 = scmp.eq.s32.totalorder %s26, 0
      %p116 = por %p114, %p115
      %s118 = sadd.s32 %s117, 1
      %p121 = scmp.eq.s32.totalorder %s20, 1
      %p122 = scmp.ne.s32.totalorder %s117, %s119
      %p123 = scmp.eq.s32.totalorder %s20, 0
      %p124 = por %p122, %p123
      %p125 = scmp.ne.s32.totalorder %s117, %s119
      %p126 = scmp.eq.s32.totalorder %s25, 1
      %p127 = por %p125, %p126
      %p128 = scmp.ne.s32.totalorder %s119, %s120
      %p129 = scmp.eq.s32.totalorder %s25, 0
      %p130 = por %p128, %p129
      %p131 = scmp.ne.s32.totalorder %s119, %s120
      %p132 = scmp.eq.s32.totalorder %s26, 1
      %p133 = por %p131, %p132
      %p135 = scmp.ne.s32.totalorder %s120, %s134
      %p136 = scmp.eq.s32.totalorder %s26, 0
      %p137 = por %p135, %p136
      %s139 = sadd.s32 %s138, 1
      %p142 = scmp.eq.s32.totalorder %s20, 1
      %p143 = scmp.ne.s32.totalorder %s138, %s140
      %p144 = scmp.eq.s32.totalorder %s20, 0
      %p145 = por %p143, %p144
      %p146 = scmp.ne.s32.totalorder %s138, %s140
      %p147 = scmp.eq.s32.totalorder %s25, 1
      %p148 = por %p146, %p147
      %p149 = scmp.ne.s32.totalorder %s140, %s141
      %p150 = scmp.eq.s32.totalorder %s25, 0
      %p151 = por %p149, %p150
      %p152 = scmp.ne.s32.totalorder %s140, %s141
      %p153 = scmp.eq.s32.totalorder %s26, 1
      %p154 = por %p152, %p153
      %p156 = scmp.ne.s32.totalorder %s141, %s155
      %p157 = scmp.eq.s32.totalorder %s26, 0
      %p158 = por %p156, %p157
      %s160 = sadd.s32 %s159, 1
      %p163 = scmp.eq.s32.totalorder %s20, 1
      %p164 = scmp.ne.s32.totalorder %s159, %s161
      %p165 = scmp.eq.s32.totalorder %s20, 0
      %p166 = por %p164, %p165
      %p167 = scmp.ne.s32.totalorder %s159, %s161
      %p168 = scmp.eq.s32.totalorder %s25, 1
      %p169 = por %p167, %p168
      %p170 = scmp.ne.s32.totalorder %s161, %s162
      %p171 = scmp.eq.s32.totalorder %s25, 0
      %p172 = por %p170, %p171
      %p173 = scmp.ne.s32.totalorder %s161, %s162
      %p174 = scmp.eq.s32.totalorder %s26, 1
      %p175 = por %p173, %p174
      %p177 = scmp.ne.s32.totalorder %s162, %s176
      %p178 = scmp.eq.s32.totalorder %s26, 0
      %p179 = por %p177, %p178
      %s181 = sadd.s32 %s180, 1
      %p184 = scmp.eq.s32.totalorder %s20, 1
      %p185 = scmp.ne.s32.totalorder %s180, %s182
      %p186 = scmp.eq.s32.totalorder %s20, 0
      %p187 = por %p185, %p186
      %p188 = scmp.ne.s32.totalorder %s180, %s182
      %p189 = scmp.eq.s32.totalorder %s25, 1
      %p190 = por %p188, %p189
      %p191 = scmp.ne.s32.totalorder %s182, %s183
      %p192 = scmp.eq.s32.totalorder %s25, 0
      %p193 = por %p191, %p192
      %p194 = scmp.ne.s32.totalorder %s182, %s183
      %p195 = scmp.eq.s32.totalorder %s26, 1
      %p196 = por %p194, %p195
      %p198 = scmp.ne.s32.totalorder %s183, %s197
      %p199 = scmp.eq.s32.totalorder %s26, 0
      %p200 = por %p198, %p199
      %s202 = sadd.s32 %s201, 1
      %p205 = scmp.eq.s32.totalorder %s20, 1
      %p206 = scmp.ne.s32.totalorder %s201, %s203
      %p207 = scmp.eq.s32.totalorder %s20, 0
      %p208 = por %p206, %p207
      %p209 = scmp.ne.s32.totalorder %s201, %s203
      %p210 = scmp.eq.s32.totalorder %s25, 1
      %p211 = por %p209, %p210
      %p212 = scmp.ne.s32.totalorder %s203, %s204
      %p213 = scmp.eq.s32.totalorder %s25, 0
      %p214 = por %p212, %p213
      %p215 = scmp.ne.s32.totalorder %s203, %s204
      %p216 = scmp.eq.s32.totalorder %s26, 1
      %p217 = por %p215, %p216
      %p219 = scmp.ne.s32.totalorder %s204, %s218
      %p220 = scmp.eq.s32.totalorder %s26, 0
      %p221 = por %p219, %p220
      %s222 = ssub.s32 %s20, %s27
      %p223 = scmp.eq.s32.totalorder %s222, 0
      %s225 = sadd.s32 %s224, 1
      %s226 = scalar_select %p223, %s224, %s225
      %p229 = pneg %p223
      %p230 = scmp.eq.s32.totalorder %s20, 1
      %p231 = por %p229, %p230
      %p232 = scmp.ne.s32.totalorder %s224, %s227
      %p233 = scmp.eq.s32.totalorder %s20, 0
      %p234 = por %p232, %p233
      %p235 = scmp.ne.s32.totalorder %s224, %s227
      %p236 = scmp.eq.s32.totalorder %s25, 1
      %p237 = por %p235, %p236
      %p238 = scmp.ne.s32.totalorder %s227, %s228
      %p239 = scmp.eq.s32.totalorder %s25, 0
      %p240 = por %p238, %p239
      %p241 = scmp.ne.s32.totalorder %s227, %s228
      %p242 = scmp.eq.s32.totalorder %s26, 1
      %p243 = por %p241, %p242
      %p245 = scmp.ne.s32.totalorder %s228, %s244
      %p246 = scmp.eq.s32.totalorder %s26, 0
      %p247 = por %p245, %p246
      %p248 = scmp.le.s32.totalorder 1, %s20
      %p249 = scmp.lt.s32.totalorder %s20, 3
      %p250 = pnand %p248, %p249
      %p251 = pneg %p250
      // Predicated region
      $region9: #{tpu_custom_call.1} parent=5 // pred_check
        _
      $region10: #{tpu_custom_call.1} parent=5 // pred_check_branch
        %253 = sbr.rel (%p250) target = $region12
      $region11: #{tpu_custom_call.1} parent=5 // pred_region
        %s254 = ssub.s32 %s20, 1
        // Predicated region
        $region13: #{tpu_custom_call.1} parent=11 // pred_check
          %p255 = pneg %p67
        $region14: #{tpu_custom_call.1} parent=11 // pred_check_branch
          %257 = sbr.rel (%p255) target = $region16
        $region15: #{tpu_custom_call.1} parent=11 // pred_region
          _
        $region16: #{tpu_custom_call.1} parent=11 // pred_fallthru
          _
        // Predicated region
        $region17: #{tpu_custom_call.1} parent=11 // pred_check
          %p258 = pneg %p88
        $region18: #{tpu_custom_call.1} parent=11 // pred_check_branch
          %260 = sbr.rel (%p258) target = $region20
        $region19: #{tpu_custom_call.1} parent=11 // pred_region
          _
        $region20: #{tpu_custom_call.1} parent=11 // pred_fallthru
          _
        // Predicated region
        $region21: #{tpu_custom_call.1} parent=11 // pred_check
          %p261 = pneg %p109
        $region22: #{tpu_custom_call.1} parent=11 // pred_check_branch
          %263 = sbr.rel (%p261) target = $region24
        $region23: #{tpu_custom_call.1} parent=11 // pred_region
          %265 = vsyncadd [#allocation3], 0
          %s266 = sshll.u32 %s3, 4
          %s267 = int_to_ptr.hbm [resolvable:$true] %s266
          %s268 = sshll.u32 [#allocation2], 4
          %s269 = int_to_ptr.vmem [resolvable:$true] %s268
          %274 = dma.hbm_to_vmem [thread:$0]  %s267, 2048, %s269, [#allocation3], 128, 128, 8
        $region24: #{tpu_custom_call.1} parent=11 // pred_fallthru
          _
        // Predicated region
        $region25: #{tpu_custom_call.1} parent=11 // pred_check
          %p275 = pneg %p130
        $region26: #{tpu_custom_call.1} parent=11 // pred_check_branch
          %277 = sbr.rel (%p275) target = $region28
        $region27: #{tpu_custom_call.1} parent=11 // pred_region
          _
        $region28: #{tpu_custom_call.1} parent=11 // pred_fallthru
          _
        // Predicated region
        $region29: #{tpu_custom_call.1} parent=11 // pred_check
          %p278 = pneg %p151
        $region30: #{tpu_custom_call.1} parent=11 // pred_check_branch
          %280 = sbr.rel (%p278) target = $region32
        $region31: #{tpu_custom_call.1} parent=11 // pred_region
          %282 = vsyncadd [#allocation6], 0
          %s283 = sshll.u32 %s5, 4
          %s284 = int_to_ptr.hbm [resolvable:$true] %s283
          %s285 = sshll.u32 [#allocation5], 4
          %s286 = int_to_ptr.vmem [resolvable:$true] %s285
          %291 = dma.hbm_to_vmem [thread:$0]  %s284, 2048, %s286, [#allocation6], 64, 64, 4
        $region32: #{tpu_custom_call.1} parent=11 // pred_fallthru
          _
        // Predicated region
        $region33: #{tpu_custom_call.1} parent=11 // pred_check
          %p292 = pneg %p172
        $region34: #{tpu_custom_call.1} parent=11 // pred_check_branch
          %294 = sbr.rel (%p292) target = $region36
        $region35: #{tpu_custom_call.1} parent=11 // pred_region
          _
        $region36: #{tpu_custom_call.1} parent=11 // pred_fallthru
          _
        // Predicated region
        $region37: #{tpu_custom_call.1} parent=11 // pred_check
          %p295 = pneg %p193
        $region38: #{tpu_custom_call.1} parent=11 // pred_check_branch
          %297 = sbr.rel (%p295) target = $region40
        $region39: #{tpu_custom_call.1} parent=11 // pred_region
          %299 = vsyncadd [#allocation6], 0
          %s300 = sshll.u32 %s7, 4
          %s301 = int_to_ptr.hbm [resolvable:$true] %s300
          %s302 = sshll.u32 [#allocation7], 4
          %s303 = int_to_ptr.vmem [resolvable:$true] %s302
          %308 = dma.hbm_to_vmem [thread:$0]  %s301, 1024, %s303, [#allocation6], 64, 64, 4
        $region40: #{tpu_custom_call.1} parent=11 // pred_fallthru
          _
        // Predicated region
        $region41: #{tpu_custom_call.1} parent=11 // pred_check
          %p309 = pneg %p214
        $region42: #{tpu_custom_call.1} parent=11 // pred_check_branch
          %311 = sbr.rel (%p309) target = $region44
        $region43: #{tpu_custom_call.1} parent=11 // pred_region
          _
        $region44: #{tpu_custom_call.1} parent=11 // pred_fallthru
          _
      $region12: #{tpu_custom_call.1} parent=5 // pred_fallthru
        _
      %p312 = scmp.lt.s32.totalorder %s20, 2
      // Predicated region
      $region45: #{tpu_custom_call.1} parent=5 // pred_check
        %p313 = pneg %p312
      $region46: #{tpu_custom_call.1} parent=5 // pred_check_branch
        %315 = sbr.rel (%p313) target = $region48
      $region47: #{tpu_custom_call.1} parent=5 // pred_region
        // Predicated region
        $region49: #{tpu_custom_call.1} parent=47 // pred_check
          %p316 = pneg %p40
        $region50: #{tpu_custom_call.1} parent=47 // pred_check_branch
          %318 = sbr.rel (%p316) target = $region52
        $region51: #{tpu_custom_call.1} parent=47 // pred_region
          %s319 = smul.u32 4, %s20
          %p320 = scmp.lt.s32.totalorder %s319, 7
          %s321 = scalar_select %p320, %s319, 7
          %s322 = smul.addr %s321, 4
          %s323 = scalar_lea.vmem %s0, %s322
          %s324 = smul.u32 4, %s20
        $region52: #{tpu_custom_call.1} parent=47 // pred_fallthru
          _
      $region48: #{tpu_custom_call.1} parent=5 // pred_fallthru
        _
      %p325 = scmp.le.s32.totalorder 1, %s20
      %p326 = scmp.lt.s32.totalorder %s20, 3
      %p327 = pnand %p325, %p326
      %p328 = pneg %p327
      // Predicated region
      $region53: #{tpu_custom_call.1} parent=5 // pred_check
        _
      $region54: #{tpu_custom_call.1} parent=5 // pred_check_branch
        %330 = sbr.rel (%p327) target = $region56
      $region55: #{tpu_custom_call.1} parent=5 // pred_region
        %s331 = ssub.s32 %s20, 1
        // Predicated region
        $region57: #{tpu_custom_call.1} parent=55 // pred_check
          %p332 = pneg %p109
        $region58: #{tpu_custom_call.1} parent=55 // pred_check_branch
          %334 = sbr.rel (%p332) target = $region60
        $region59: #{tpu_custom_call.1} parent=55 // pred_region
          %336 = dma.done [#allocation3], 2048
        $region60: #{tpu_custom_call.1} parent=55 // pred_fallthru
          _
        // Predicated region
        $region61: #{tpu_custom_call.1} parent=55 // pred_check
          %p337 = pneg %p151
        $region62: #{tpu_custom_call.1} parent=55 // pred_check_branch
          %339 = sbr.rel (%p337) target = $region64
        $region63: #{tpu_custom_call.1} parent=55 // pred_region
          %341 = dma.done [#allocation6], 2048
        $region64: #{tpu_custom_call.1} parent=55 // pred_fallthru
          _
        // Predicated region
        $region65: #{tpu_custom_call.1} parent=55 // pred_check
          %p342 = pneg %p193
        $region66: #{tpu_custom_call.1} parent=55 // pred_check_branch
          %344 = sbr.rel (%p342) target = $region68
        $region67: #{tpu_custom_call.1} parent=55 // pred_region
          %346 = dma.done [#allocation6], 1024
        $region68: #{tpu_custom_call.1} parent=55 // pred_fallthru
          _
        %s347 = smul.u32 4, %s25
        %p348 = scmp.lt.s32.totalorder %s347, 7
        %s349 = scalar_select %p348, %s347, 7
        %s350 = smul.addr %s349, 4
        %s351 = scalar_lea.vmem %s0, %s350
        %p352 = pneg %p46
        %p353 = pneg %p43
        %p354 = pneg %p67
        %p355 = pneg %p64
        %p356 = pneg %p88
        %p357 = pneg %p85
        %p358 = pneg %p109
        %p359 = pneg %p106
        %p360 = pneg %p130
        %p361 = pneg %p127
        %p362 = pneg %p151
        %p363 = pneg %p148
        %p364 = pneg %p172
        %p365 = pneg %p169
        %p366 = pneg %p193
        %p367 = pneg %p190
        %p368 = pneg %p214
        %p369 = pneg %p211
        %p370 = pneg %p240
        %p371 = pneg %p237
        %s372 = sand.u32 %s227, 1
        %s373 = scalar_lea.sflag [#allocation4], %s372
        %s374 = sand.u32 %s227, 1
        %s375 = smul.addr %s374, 32
        %s376 = scalar_lea.vmem [#allocation8], %s375
        %s377 = smul.u32 4, %s25
        %p378 = scmp.lt.s32.totalorder %s377, 7
        %s379 = scalar_select %p378, %s377, 7
        %s380 = smul.addr %s379, 4
        %s381 = scalar_lea.vmem %s0, %s380
        %s382 = smul.u32 4, %s25
        %s383 = smul.u32 4, %s25
        %v385 = vld [vmem:[%s381] sm:$0xf]
        %v386 = vld [vmem:[%s381 + $0x4] sm:$0xf]
        %v387 = vld [vmem:[%s381 + $0x8] sm:$0xf]
        %v388 = vld [vmem:[%s381 + $0xc] sm:$0xf]
        %v389 = vld [vmem:[%s1] sm:$0xf]
        %v390 = vld [vmem:[%s1 + $0x4] sm:$0xf]
        %v391 = vld [vmem:[%s2] sm:$0x1]
        %v393 = vperm.slane %v391, 0
        %v399 = vunpack.c.l.b16 %v385
        %v400 = vunpack.c.l.b16 %v386
        %v401 = vunpack.c.l.b16 %v387
        %v402 = vunpack.c.l.b16 %v388
        %v403 = vpack.c.b16 %v400, %v399
        %v404 = vpack.c.b16 %v402, %v401
        %v407 = vunpack.c.l.b16 %v389
        %v408 = vunpack.c.l.b16 %v390
        %v409 = vpack.c.b16 %v408, %v407
        %vm411 = vcmask 130048
        %v413 = vsel %vm411, %v403, 0
        %v416 = vsel %vm411, %v404, 0
        %418 = vmatpush.bf16.msra.mxu0 0
        %419 = vmatpush.bf16.msra.mxu0 0
        %420 = vmatpush.bf16.msra.mxu0 0
        %421 = vmatpush.bf16.msra.mxu0 0
        %422 = vmatpush.bf16.msra.mxu0 0
        %423 = vmatpush.bf16.msra.mxu0 0
        %424 = vmatpush.bf16.msra.mxu0 0
        %425 = vmatpush.bf16.msra.mxu0 %v409
        %426 = vmatmul.bf16.gmra.mxu0 %v413
        %v427 = vpop.f32.mrf.mxu0
        %v428 = vadd.f32 %v393, %v427
        %v429 = vpop.f32.mrf.mxu0
        %v430 = vadd.f32 %v393, %v429
        %431 = vmatmul.bf16.gmra.mxu0 %v416
        %v432 = vpop.f32.mrf.mxu0
        %v433 = vadd.f32 %v393, %v432
        %v434 = vpop.f32.mrf.mxu0
        %v435 = vadd.f32 %v393, %v434
        %436 = vdwg.mxu0
        %v437 = vmax.f32 %v428, 0.0
        %v438 = vmax.f32 %v430, 0.0
        %v439 = vmax.f32 %v433, 0.0
        %v440 = vmax.f32 %v435, 0.0
        %v441 = vpack.c.bf16 %v438, %v437
        %v442 = vpack.c.bf16 %v440, %v439
        %v443 = vld [vmem:[#allocation2] sm:$0xff]
        %v444 = vld [vmem:[#allocation2 + $0x8] sm:$0xff]
        %v445 = vld [vmem:[#allocation2 + $0x10] sm:$0xff]
        %v446 = vld [vmem:[#allocation2 + $0x18] sm:$0xff]
        %v447 = vld [vmem:[#allocation2 + $0x20] sm:$0xff]
        %v448 = vld [vmem:[#allocation2 + $0x28] sm:$0xff]
        %v449 = vld [vmem:[#allocation2 + $0x30] sm:$0xff]
        %v450 = vld [vmem:[#allocation2 + $0x38] sm:$0xff]
        %v451 = vld [vmem:[#allocation2 + $0x40] sm:$0xff]
        %v452 = vld [vmem:[#allocation2 + $0x48] sm:$0xff]
        %v453 = vld [vmem:[#allocation2 + $0x50] sm:$0xff]
        %v454 = vld [vmem:[#allocation2 + $0x58] sm:$0xff]
        %v455 = vld [vmem:[#allocation2 + $0x60] sm:$0xff]
        %v456 = vld [vmem:[#allocation2 + $0x68] sm:$0xff]
        %v457 = vld [vmem:[#allocation2 + $0x70] sm:$0xff]
        %v458 = vld [vmem:[#allocation2 + $0x78] sm:$0xff]
        %v459 = vld [vmem:[%s4] sm:$0x3]
        %v461 = vperm.slane %v459, 0
        %v462 = vperm.slane %v459, 1
        %v481 = vunpack.c.l.b16 %v443
        %v482 = vunpack.c.h.b16 %v443
        %v483 = vunpack.c.l.b16 %v444
        %v484 = vunpack.c.h.b16 %v444
        %v485 = vunpack.c.l.b16 %v445
        %v486 = vunpack.c.h.b16 %v445
        %v487 = vunpack.c.l.b16 %v446
        %v488 = vunpack.c.h.b16 %v446
        %v489 = vunpack.c.l.b16 %v447
        %v490 = vunpack.c.h.b16 %v447
        %v491 = vunpack.c.l.b16 %v448
        %v492 = vunpack.c.h.b16 %v448
        %v493 = vunpack.c.l.b16 %v449
        %v494 = vunpack.c.h.b16 %v449
        %v495 = vunpack.c.l.b16 %v450
        %v496 = vunpack.c.h.b16 %v450
        %v497 = vunpack.c.l.b16 %v451
        %v498 = vunpack.c.h.b16 %v451
        %v499 = vunpack.c.l.b16 %v452
        %v500 = vunpack.c.h.b16 %v452
        %v501 = vunpack.c.l.b16 %v453
        %v502 = vunpack.c.h.b16 %v453
        %v503 = vunpack.c.l.b16 %v454
        %v504 = vunpack.c.h.b16 %v454
        %v505 = vunpack.c.l.b16 %v455
        %v506 = vunpack.c.h.b16 %v455
        %v507 = vunpack.c.l.b16 %v456
        %v508 = vunpack.c.h.b16 %v456
        %v509 = vunpack.c.l.b16 %v457
        %v510 = vunpack.c.h.b16 %v457
        %v511 = vunpack.c.l.b16 %v458
        %v512 = vunpack.c.h.b16 %v458
        %v513 = vpack.c.b16 %v483, %v481
        %v514 = vpack.c.b16 %v484, %v482
        %v515 = vpack.c.b16 %v487, %v485
        %v516 = vpack.c.b16 %v488, %v486
        %v517 = vpack.c.b16 %v491, %v489
        %v518 = vpack.c.b16 %v492, %v490
        %v519 = vpack.c.b16 %v495, %v493
        %v520 = vpack.c.b16 %v496, %v494
        %v521 = vpack.c.b16 %v499, %v497
        %v522 = vpack.c.b16 %v500, %v498
        %v523 = vpack.c.b16 %v503, %v501
        %v524 = vpack.c.b16 %v504, %v502
        %v525 = vpack.c.b16 %v507, %v505
        %v526 = vpack.c.b16 %v508, %v506
        %v527 = vpack.c.b16 %v511, %v509
        %v528 = vpack.c.b16 %v512, %v510
        %545 = vmatpush.bf16.msra.mxu0 %v527
        %546 = vmatpush.bf16.msra.mxu0 %v525
        %547 = vmatpush.bf16.msra.mxu0 %v523
        %548 = vmatpush.bf16.msra.mxu0 %v521
        %549 = vmatpush.bf16.msra.mxu0 %v519
        %550 = vmatpush.bf16.msra.mxu0 %v517
        %551 = vmatpush.bf16.msra.mxu0 %v515
        %552 = vmatpush.bf16.msra.mxu0 %v513
        %553 = vmatmul.bf16.gmra.mxu0 %v441
        %v554 = vpop.f32.mrf.mxu0
        %v555 = vadd.f32 %v461, %v554
        %v556 = vpop.f32.mrf.mxu0
        %v557 = vadd.f32 %v461, %v556
        %558 = vmatmul.bf16.gmra.mxu0 %v442
        %v559 = vpop.f32.mrf.mxu0
        %v560 = vadd.f32 %v461, %v559
        %v561 = vpop.f32.mrf.mxu0
        %v562 = vadd.f32 %v461, %v561
        %563 = vdwg.mxu0
        %564 = vmatpush.bf16.msra.mxu0 %v528
        %565 = vmatpush.bf16.msra.mxu0 %v526
        %566 = vmatpush.bf16.msra.mxu0 %v524
        %567 = vmatpush.bf16.msra.mxu0 %v522
        %568 = vmatpush.bf16.msra.mxu0 %v520
        %569 = vmatpush.bf16.msra.mxu0 %v518
        %570 = vmatpush.bf16.msra.mxu0 %v516
        %571 = vmatpush.bf16.msra.mxu0 %v514
        %572 = vmatmul.bf16.gmra.mxu0 %v441
        %v573 = vpop.f32.mrf.mxu0
        %v574 = vadd.f32 %v462, %v573
        %v575 = vpop.f32.mrf.mxu0
        %v576 = vadd.f32 %v462, %v575
        %577 = vmatmul.bf16.gmra.mxu0 %v442
        %v578 = vpop.f32.mrf.mxu0
        %v579 = vadd.f32 %v462, %v578
        %v580 = vpop.f32.mrf.mxu0
        %v581 = vadd.f32 %v462, %v580
        %582 = vdwg.mxu0
        %v583 = vmax.f32 %v555, 0.0
        %v584 = vmax.f32 %v574, 0.0
        %v585 = vmax.f32 %v557, 0.0
        %v586 = vmax.f32 %v576, 0.0
        %v587 = vmax.f32 %v560, 0.0
        %v588 = vmax.f32 %v579, 0.0
        %v589 = vmax.f32 %v562, 0.0
        %v590 = vmax.f32 %v581, 0.0
        %v591 = vpack.c.bf16 %v585, %v583
        %v592 = vpack.c.bf16 %v586, %v584
        %v593 = vpack.c.bf16 %v589, %v587
        %v594 = vpack.c.bf16 %v590, %v588
        %v595 = vld [vmem:[#allocation5] sm:$0xf]
        %v596 = vld [vmem:[#allocation5 + $0x4] sm:$0xf]
        %v597 = vld [vmem:[#allocation5 + $0x8] sm:$0xf]
        %v598 = vld [vmem:[#allocation5 + $0xc] sm:$0xf]
        %v599 = vld [vmem:[#allocation5 + $0x10] sm:$0xf]
        %v600 = vld [vmem:[#allocation5 + $0x14] sm:$0xf]
        %v601 = vld [vmem:[#allocation5 + $0x18] sm:$0xf]
        %v602 = vld [vmem:[#allocation5 + $0x1c] sm:$0xf]
        %v603 = vld [vmem:[#allocation5 + $0x20] sm:$0xf]
        %v604 = vld [vmem:[#allocation5 + $0x24] sm:$0xf]
        %v605 = vld [vmem:[#allocation5 + $0x28] sm:$0xf]
        %v606 = vld [vmem:[#allocation5 + $0x2c] sm:$0xf]
        %v607 = vld [vmem:[#allocation5 + $0x30] sm:$0xf]
        %v608 = vld [vmem:[#allocation5 + $0x34] sm:$0xf]
        %v609 = vld [vmem:[#allocation5 + $0x38] sm:$0xf]
        %v610 = vld [vmem:[#allocation5 + $0x3c] sm:$0xf]
        %v611 = vld [vmem:[#allocation5 + $0x40] sm:$0xf]
        %v612 = vld [vmem:[#allocation5 + $0x44] sm:$0xf]
        %v613 = vld [vmem:[#allocation5 + $0x48] sm:$0xf]
        %v614 = vld [vmem:[#allocation5 + $0x4c] sm:$0xf]
        %v615 = vld [vmem:[#allocation5 + $0x50] sm:$0xf]
        %v616 = vld [vmem:[#allocation5 + $0x54] sm:$0xf]
        %v617 = vld [vmem:[#allocation5 + $0x58] sm:$0xf]
        %v618 = vld [vmem:[#allocation5 + $0x5c] sm:$0xf]
        %v619 = vld [vmem:[#allocation5 + $0x60] sm:$0xf]
        %v620 = vld [vmem:[#allocation5 + $0x64] sm:$0xf]
        %v621 = vld [vmem:[#allocation5 + $0x68] sm:$0xf]
        %v622 = vld [vmem:[#allocation5 + $0x6c] sm:$0xf]
        %v623 = vld [vmem:[#allocation5 + $0x70] sm:$0xf]
        %v624 = vld [vmem:[#allocation5 + $0x74] sm:$0xf]
        %v625 = vld [vmem:[#allocation5 + $0x78] sm:$0xf]
        %v626 = vld [vmem:[#allocation5 + $0x7c] sm:$0xf]
        %v627 = vld [vmem:[%s6] sm:$0x1]
        %v629 = vperm.slane %v627, 0
        %v663 = vunpack.c.l.b16 %v595
        %v664 = vunpack.c.l.b16 %v596
        %v665 = vunpack.c.l.b16 %v597
        %v666 = vunpack.c.l.b16 %v598
        %v667 = vunpack.c.l.b16 %v599
        %v668 = vunpack.c.l.b16 %v600
        %v669 = vunpack.c.l.b16 %v601
        %v670 = vunpack.c.l.b16 %v602
        %v671 = vunpack.c.l.b16 %v603
        %v672 = vunpack.c.l.b16 %v604
        %v673 = vunpack.c.l.b16 %v605
        %v674 = vunpack.c.l.b16 %v606
        %v675 = vunpack.c.l.b16 %v607
        %v676 = vunpack.c.l.b16 %v608
        %v677 = vunpack.c.l.b16 %v609
        %v678 = vunpack.c.l.b16 %v610
        %v679 = vunpack.c.l.b16 %v611
        %v680 = vunpack.c.l.b16 %v612
        %v681 = vunpack.c.l.b16 %v613
        %v682 = vunpack.c.l.b16 %v614
        %v683 = vunpack.c.l.b16 %v615
        %v684 = vunpack.c.l.b16 %v616
        %v685 = vunpack.c.l.b16 %v617
        %v686 = vunpack.c.l.b16 %v618
        %v687 = vunpack.c.l.b16 %v619
        %v688 = vunpack.c.l.b16 %v620
        %v689 = vunpack.c.l.b16 %v621
        %v690 = vunpack.c.l.b16 %v622
        %v691 = vunpack.c.l.b16 %v623
        %v692 = vunpack.c.l.b16 %v624
        %v693 = vunpack.c.l.b16 %v625
        %v694 = vunpack.c.l.b16 %v626
        %v695 = vpack.c.b16 %v664, %v663
        %v696 = vpack.c.b16 %v666, %v665
        %v697 = vpack.c.b16 %v668, %v667
        %v698 = vpack.c.b16 %v670, %v669
        %v699 = vpack.c.b16 %v672, %v671
        %v700 = vpack.c.b16 %v674, %v673
        %v701 = vpack.c.b16 %v676, %v675
        %v702 = vpack.c.b16 %v678, %v677
        %v703 = vpack.c.b16 %v680, %v679
        %v704 = vpack.c.b16 %v682, %v681
        %v705 = vpack.c.b16 %v684, %v683
        %v706 = vpack.c.b16 %v686, %v685
        %v707 = vpack.c.b16 %v688, %v687
        %v708 = vpack.c.b16 %v690, %v689
        %v709 = vpack.c.b16 %v692, %v691
        %v710 = vpack.c.b16 %v694, %v693
        %727 = vmatpush.bf16.msra.mxu0 %v702
        %728 = vmatpush.bf16.msra.mxu0 %v701
        %729 = vmatpush.bf16.msra.mxu0 %v700
        %730 = vmatpush.bf16.msra.mxu0 %v699
        %731 = vmatpush.bf16.msra.mxu0 %v698
        %732 = vmatpush.bf16.msra.mxu0 %v697
        %733 = vmatpush.bf16.msra.mxu0 %v696
        %734 = vmatpush.bf16.msra.mxu0 %v695
        %735 = vmatmul.bf16.gmra.mxu0 %v591
        %v736 = vpop.f32.mrf.mxu0
        %v737 = vadd.f32 %v629, %v736
        %v738 = vpop.f32.mrf.mxu0
        %v739 = vadd.f32 %v629, %v738
        %740 = vmatmul.bf16.gmra.mxu0 %v593
        %v741 = vpop.f32.mrf.mxu0
        %v742 = vadd.f32 %v629, %v741
        %v743 = vpop.f32.mrf.mxu0
        %v744 = vadd.f32 %v629, %v743
        %745 = vdwg.mxu0
        %746 = vmatpush.bf16.msra.mxu0 %v710
        %747 = vmatpush.bf16.msra.mxu0 %v709
        %748 = vmatpush.bf16.msra.mxu0 %v708
        %749 = vmatpush.bf16.msra.mxu0 %v707
        %750 = vmatpush.bf16.msra.mxu0 %v706
        %751 = vmatpush.bf16.msra.mxu0 %v705
        %752 = vmatpush.bf16.msra.mxu0 %v704
        %753 = vmatpush.bf16.msra.mxu0 %v703
        %754 = vmatmul.bf16.gmra.mxu0 %v592
        %v755 = vpop.f32.mrf.mxu0
        %v756 = vadd.f32 %v737, %v755
        %v757 = vpop.f32.mrf.mxu0
        %v758 = vadd.f32 %v739, %v757
        %759 = vmatmul.bf16.gmra.mxu0 %v594
        %v760 = vpop.f32.mrf.mxu0
        %v761 = vadd.f32 %v742, %v760
        %v762 = vpop.f32.mrf.mxu0
        %v763 = vadd.f32 %v744, %v762
        %764 = vdwg.mxu0
        %v765 = vmax.f32 %v756, 0.0
        %v766 = vmax.f32 %v758, 0.0
        %v767 = vmax.f32 %v761, 0.0
        %v768 = vmax.f32 %v763, 0.0
        %v769 = vpack.c.bf16 %v766, %v765
        %v770 = vpack.c.bf16 %v768, %v767
        %v771 = vld [vmem:[#allocation7] sm:$0xf]
        %v772 = vld [vmem:[#allocation7 + $0x4] sm:$0xf]
        %v773 = vld [vmem:[#allocation7 + $0x8] sm:$0xf]
        %v774 = vld [vmem:[#allocation7 + $0xc] sm:$0xf]
        %v775 = vld [vmem:[#allocation7 + $0x10] sm:$0xf]
        %v776 = vld [vmem:[#allocation7 + $0x14] sm:$0xf]
        %v777 = vld [vmem:[#allocation7 + $0x18] sm:$0xf]
        %v778 = vld [vmem:[#allocation7 + $0x1c] sm:$0xf]
        %v779 = vld [vmem:[#allocation7 + $0x20] sm:$0xf]
        %v780 = vld [vmem:[#allocation7 + $0x24] sm:$0xf]
        %v781 = vld [vmem:[#allocation7 + $0x28] sm:$0xf]
        %v782 = vld [vmem:[#allocation7 + $0x2c] sm:$0xf]
        %v783 = vld [vmem:[#allocation7 + $0x30] sm:$0xf]
        %v784 = vld [vmem:[#allocation7 + $0x34] sm:$0xf]
        %v785 = vld [vmem:[#allocation7 + $0x38] sm:$0xf]
        %v786 = vld [vmem:[#allocation7 + $0x3c] sm:$0xf]
        %v787 = vld [vmem:[%s8] sm:$0x1]
        %v789 = vperm.slane %v787, 0
        %v807 = vunpack.c.l.b16 %v771
        %v808 = vunpack.c.l.b16 %v772
        %v809 = vunpack.c.l.b16 %v773
        %v810 = vunpack.c.l.b16 %v774
        %v811 = vunpack.c.l.b16 %v775
        %v812 = vunpack.c.l.b16 %v776
        %v813 = vunpack.c.l.b16 %v777
        %v814 = vunpack.c.l.b16 %v778
        %v815 = vunpack.c.l.b16 %v779
        %v816 = vunpack.c.l.b16 %v780
        %v817 = vunpack.c.l.b16 %v781
        %v818 = vunpack.c.l.b16 %v782
        %v819 = vunpack.c.l.b16 %v783
        %v820 = vunpack.c.l.b16 %v784
        %v821 = vunpack.c.l.b16 %v785
        %v822 = vunpack.c.l.b16 %v786
        %v823 = vpack.c.b16 %v808, %v807
        %v824 = vpack.c.b16 %v810, %v809
        %v825 = vpack.c.b16 %v812, %v811
        %v826 = vpack.c.b16 %v814, %v813
        %v827 = vpack.c.b16 %v816, %v815
        %v828 = vpack.c.b16 %v818, %v817
        %v829 = vpack.c.b16 %v820, %v819
        %v830 = vpack.c.b16 %v822, %v821
        %839 = vmatpush.bf16.msra.mxu0 %v830
        %840 = vmatpush.bf16.msra.mxu0 %v829
        %841 = vmatpush.bf16.msra.mxu0 %v828
        %842 = vmatpush.bf16.msra.mxu0 %v827
        %843 = vmatpush.bf16.msra.mxu0 %v826
        %844 = vmatpush.bf16.msra.mxu0 %v825
        %845 = vmatpush.bf16.msra.mxu0 %v824
        %846 = vmatpush.bf16.msra.mxu0 %v823
        %847 = vmatmul.bf16.gmra.mxu0 %v769
        %v848 = vpop.f32.mrf.mxu0
        %v849 = vadd.f32 %v789, %v848
        %v850 = vpop.f32.mrf.mxu0
        %v851 = vadd.f32 %v789, %v850
        %852 = vmatmul.bf16.gmra.mxu0 %v770
        %v853 = vpop.f32.mrf.mxu0
        %v854 = vadd.f32 %v789, %v853
        %v855 = vpop.f32.mrf.mxu0
        %v856 = vadd.f32 %v789, %v855
        %857 = vdwg.mxu0
        %858 = vmax.xlane.f32.xlu0 %v849
        %v859 = vpop.xlane.xlu0 %858
        %860 = vmax.xlane.f32.xlu0 %v851
        %v861 = vpop.xlane.xlu0 %860
        %862 = vmax.xlane.f32.xlu0 %v854
        %v863 = vpop.xlane.xlu0 %862
        %864 = vmax.xlane.f32.xlu0 %v856
        %v865 = vpop.xlane.xlu0 %864
        %v866 = vsub.f32 %v849, %v859
        %v867 = vsub.f32 %v851, %v861
        %v868 = vsub.f32 %v854, %v863
        %v869 = vsub.f32 %v856, %v865
        %v870 = vmul.f32 %v866, 1.442695
        %v871 = vpow.pop %v870
        %v872 = vmul.f32 %v867, 1.442695
        %v873 = vpow.pop %v872
        %v874 = vmul.f32 %v868, 1.442695
        %v875 = vpow.pop %v874
        %v876 = vmul.f32 %v869, 1.442695
        %v877 = vpow.pop %v876
        %878 = vadd.xlane.f32.xlu0 %v871
        %v879 = vpop.xlane.xlu0 %878
        %880 = vadd.xlane.f32.xlu0 %v873
        %v881 = vpop.xlane.xlu0 %880
        %882 = vadd.xlane.f32.xlu0 %v875
        %v883 = vpop.xlane.xlu0 %882
        %884 = vadd.xlane.f32.xlu0 %v877
        %v885 = vpop.xlane.xlu0 %884
        %v886 = vrcp.pop %v879
        %v887 = vrcp.pop %v881
        %v888 = vrcp.pop %v883
        %v889 = vrcp.pop %v885
        %v890 = vmul.f32 %v879, %v886
        %v891 = vmul.f32 %v881, %v887
        %v892 = vmul.f32 %v883, %v888
        %v893 = vmul.f32 %v885, %v889
        %v894 = vsub.f32 2.0, %v890
        %v895 = vsub.f32 2.0, %v891
        %v896 = vsub.f32 2.0, %v892
        %v897 = vsub.f32 2.0, %v893
        %v898 = vmul.f32 %v886, %v894
        %v899 = vmul.f32 %v887, %v895
        %v900 = vmul.f32 %v888, %v896
        %v901 = vmul.f32 %v889, %v897
        %v902 = vmul.f32 %v871, %v898
        %v903 = vmul.f32 %v873, %v899
        %v904 = vmul.f32 %v875, %v900
        %v905 = vmul.f32 %v877, %v901
        %906 = vst [vmem:[%s376] sm:$0xff] %v902
        %907 = vst [vmem:[%s376 + $0x8] sm:$0xff] %v903
        %908 = vst [vmem:[%s376 + $0x10] sm:$0xff] %v904
        %909 = vst [vmem:[%s376 + $0x18] sm:$0xff] %v905
        %s910 = sand.u32 %s227, 1
        %s911 = scalar_lea.sflag [#allocation4], %s910
        %s912 = sand.u32 %s227, 1
        %s913 = smul.addr %s912, 32
        %s914 = scalar_lea.vmem [#allocation8], %s913
        // Predicated region
        $region69: #{tpu_custom_call.1} parent=55 // pred_check
          %p915 = pneg %p237
        $region70: #{tpu_custom_call.1} parent=55 // pred_check_branch
          %917 = sbr.rel (%p915) target = $region72
        $region71: #{tpu_custom_call.1} parent=55 // pred_region
          %s918 = smul.u32 4, %s25
          %920 = vsyncadd %s911, 0
          %s921 = smul.addr %s918, 8
          %s922 = scalar_lea.hbm %s9, %s921
          %s923 = sshll.u32 %s914, 4
          %s924 = int_to_ptr.vmem [resolvable:$true] %s923
          %s925 = sshll.u32 %s922, 4
          %s926 = int_to_ptr.hbm [resolvable:$true] %s925
          %931 = dma.vmem_to_hbm [thread:$0]  %s924, 512, %s926, %s911, 128, 128, 8
        $region72: #{tpu_custom_call.1} parent=55 // pred_fallthru
          _
      $region56: #{tpu_custom_call.1} parent=5 // pred_fallthru
        _
      %p932 = scmp.le.s32.totalorder 2, %s20
      // Predicated region
      $region73: #{tpu_custom_call.1} parent=5 // pred_check
        %p933 = pneg %p932
      $region74: #{tpu_custom_call.1} parent=5 // pred_check_branch
        %935 = sbr.rel (%p933) target = $region76
      $region75: #{tpu_custom_call.1} parent=5 // pred_region
        %s936 = ssub.s32 %s20, 2
        // Predicated region
        $region77: #{tpu_custom_call.1} parent=75 // pred_check
          %p937 = pneg %p243
        $region78: #{tpu_custom_call.1} parent=75 // pred_check_branch
          %939 = sbr.rel (%p937) target = $region80
        $region79: #{tpu_custom_call.1} parent=75 // pred_region
          %s940 = sand.u32 %s228, 1
          %s941 = scalar_lea.sflag [#allocation4], %s940
          %s942 = sand.u32 %s228, 1
          %s943 = smul.addr %s942, 32
          %s944 = scalar_lea.vmem [#allocation8], %s943
          %946 = dma.done %s941, 512
        $region80: #{tpu_custom_call.1} parent=75 // pred_fallthru
          _
      $region76: #{tpu_custom_call.1} parent=5 // pred_fallthru
        _
    $region6: #{tpu_custom_call.1} parent=1 // loop_footer
      %s24 = sadd.s32 1, %s20
    $region7: #{tpu_custom_call.1} parent=1 // loop_footer_branch
      %19 = sbr.rel target = $region3
    $region8: #{tpu_custom_call.1} parent=1 // loop_exit
      _
    %947 = vsyncpa [#allocation3], 1
    %s948 = scalar_lea.sflag [#allocation3], 1
    %949 = vsyncpa %s948, 1
    %950 = vsyncpa [#allocation6], 1
    %951 = vsyncpa [#allocation4], 1
    %s952 = scalar_lea.sflag [#allocation4], 1
    %953 = vsyncpa %s952, 1

</llo_original>
